<compile_context>
chip_gen: v5e
topology: v5e:2x2
jax: 0.10.0
libtpu: 0.0.40
codegen_flags: <defaults>
</compile_context>

<pallas_src>
import math

import jax
import jax.numpy as jnp
from jax.experimental import pallas as pl
from jax.experimental.pallas import tpu as pltpu


def _pointwise_conv_kernel(x_ref, w_ref, b_ref, o_ref):
    # x_ref: (1, C_in, TS), w_ref: (C_out, C_in), b_ref: (C_out, 1), o_ref: (1, C_out, TS)
    x = x_ref[0]                                                      # (C_in, TS), lane-dense
    # Channel mix as a tiny-K matmul; the op is HBM-bandwidth bound so MXU
    # under-utilization at small C_in/C_out is irrelevant, and the same jnp.dot
    # fills the MXU properly when reused at mid-network channel counts.
    acc = jnp.dot(w_ref[...], x, preferred_element_type=jnp.float32)  # (C_out, TS) f32
    o_ref[0] = (acc + b_ref[...]).astype(o_ref.dtype)


def _vmem_limit_bytes():
    """Generation-aware scoped-VMEM limit: ~75% of physical VMEM, capped at 100 MiB.
    (128 MiB chips -> 96 MiB; v7x 64 MiB -> 48 MiB; fallback 48 MiB if query fails.)"""
    cap = 64 * 1024 * 1024
    try:
        info = pltpu.get_tpu_info()
        cap = int(getattr(info, "vmem_capacity_bytes", cap))
    except Exception:
        pass
    return int(max(32 * 1024 * 1024, min(cap * 3 // 4, 100 * 1024 * 1024)))


def _pick_spatial_tile(S, c_in, c_out, n_batch, *, in_itemsize, out_itemsize,
                       vmem_budget_bytes, target_block_bytes=3 * 1024 * 1024,
                       min_grid_steps=8):
    """Lane-aligned (multiple-of-128) spatial tile targeting a ~2-4 MiB input block,
    >= min_grid_steps grid steps, and a full (double-buffered in/out/weight/bias +
    f32 accumulator) footprint under the VMEM budget."""
    if S <= 128:
        return S  # tiny volume: single full-extent block is legal and cheapest

    def footprint(ts):
        in_blk = c_in * ts * in_itemsize
        out_blk = c_out * ts * out_itemsize
        acc = c_out * ts * 4                              # f32 dot result / astype temp
        xcast = c_in * ts * 4 if in_itemsize < 4 else 0   # possible f32 upcast of x
        w = c_out * c_in * 4
        b = c_out * 4
        return 2 * (in_blk + out_blk + w + b) + acc + xcast

    # Target ~target_block_bytes for the input block (HBM roofline saturates there).
    ts = max(128, (target_block_bytes // max(1, c_in * in_itemsize)) // 128 * 128)
    ts = min(ts, (S // 128) * 128)

    # Shrink until the whole VMEM footprint fits the budget.
    while ts > 128 and footprint(ts) > vmem_budget_bytes:
        ts -= 128

    # Ensure enough grid steps for pipeline depth / megacore balance.
    while ts > 128 and n_batch * pl.cdiv(S, ts) < min_grid_steps:
        new_ts = max(128, ((ts // 2) // 128) * 128)
        if new_ts == ts:
            break
        ts = new_ts
    return ts


def pointwise_conv3d(x_ncdhw, weight, bias):
    """1x1x1 Conv3d forward.

    x_ncdhw: (N, C_in, D, H, W)
    weight : (C_out, C_in, 1, 1, 1)  -- PyTorch Conv3d weight layout
    bias   : (C_out,)
    returns: (N, C_out, D, H, W)
    """
    N, C_in, D, H, W = x_ncdhw.shape
    C_out = weight.shape[0]
    S = D * H * W

    # Free reshape: collapses contiguous trailing spatial dims (no transpose, no copy).
    x3 = x_ncdhw.reshape(N, C_in, S)
    w2d = weight.reshape(C_out, C_in).astype(x3.dtype)    # (C_out, C_in)
    b2d = bias.reshape(C_out, 1).astype(jnp.float32)      # (C_out, 1)

    in_itemsize = x3.dtype.itemsize
    out_itemsize = in_itemsize
    vmem_limit = _vmem_limit_bytes()
    # Leave headroom for Mosaic internal scratch when sizing our own buffers.
    tile_budget = max(8 * 1024 * 1024, vmem_limit - 16 * 1024 * 1024)

    TS = _pick_spatial_tile(S, C_in, C_out, N,
                            in_itemsize=in_itemsize, out_itemsize=out_itemsize,
                            vmem_budget_bytes=tile_budget)
    num_s_tiles = pl.cdiv(S, TS)          # ragged last tile handled by masked edge block
    grid = (num_s_tiles, N)               # large (spatial) axis leads -> megacore splits it

    cost = pl.CostEstimate(
        flops=2 * N * S * C_in * C_out,
        transcendentals=0,
        bytes_accessed=(N * S * (C_in * in_itemsize + C_out * out_itemsize)
                        + C_out * C_in * 4 + C_out * 4),
    )

    out3 = pl.pallas_call(
        _pointwise_conv_kernel,
        out_shape=jax.ShapeDtypeStruct((N, C_out, S), x3.dtype),
        grid_spec=pltpu.PrefetchScalarGridSpec(
            num_scalar_prefetch=0,
            grid=grid,
            in_specs=[
                pl.BlockSpec((1, C_in, TS), lambda j, n: (n, 0, j)),
                pl.BlockSpec((C_out, C_in), lambda j, n: (0, 0)),
                pl.BlockSpec((C_out, 1), lambda j, n: (0, 0)),
            ],
            out_specs=pl.BlockSpec((1, C_out, TS), lambda j, n: (n, 0, j)),
        ),
        compiler_params=pltpu.CompilerParams(
            dimension_semantics=("parallel", "parallel"),
            vmem_limit_bytes=vmem_limit,
        ),
        cost_estimate=cost,
    )(x3, w2d, b2d)

    return out3.reshape(N, C_out, D, H, W)


def init_params(key, c_in, c_out):
    """Deterministic init matching nn.Conv3d(k=1) + xavier_uniform_ on weight."""
    kw, kb = jax.random.split(key)
    # Xavier uniform: bound = sqrt(6 / (fan_in + fan_out)), fan_in=c_in, fan_out=c_out (k=1).
    w_bound = math.sqrt(6.0 / (c_in + c_out))
    weight = jax.random.uniform(
        kw, (c_out, c_in, 1, 1, 1), jnp.float32, minval=-w_bound, maxval=w_bound)
    # PyTorch default Conv3d bias init: U(-1/sqrt(fan_in), 1/sqrt(fan_in)).
    b_bound = 1.0 / math.sqrt(c_in)
    bias = jax.random.uniform(kb, (c_out,), jnp.float32, minval=-b_bound, maxval=b_bound)
    return weight, bias


def _reference(x, weight, bias):
    c_out, c_in = weight.shape[0], weight.shape[1]
    return (jnp.einsum("ncdhw,oc->nodhw", x, weight.reshape(c_out, c_in))
            + bias.reshape(1, c_out, 1, 1, 1))


if __name__ == "__main__":
    key = jax.random.PRNGKey(0)
    k_x1, k_x2, k_p = jax.random.split(key, 3)

    # Matches the Unet_3 `out` head: Conv(c, 1) with c = NET_CHA = 4.
    N, C_in, C_out = 2, 4, 1
    weight, bias = init_params(k_p, C_in, C_out)

    # Case 1: lane-aligned volume (8^3 -> S = 512, multiple of 128).
    x1 = jax.random.normal(k_x1, (N, C_in, 8, 8, 8), jnp.float32)
    y1 = jax.block_until_ready(pointwise_conv3d(x1, weight, bias))
    ref1 = _reference(x1, weight, bias)
    assert y1.shape == (N, C_out, 8, 8, 8)
    assert jnp.allclose(y1, ref1, atol=1e-5, rtol=1e-5)

    # Case 2: ragged volume (6^3 -> S = 216, not a multiple of 128) exercising the
    # cdiv grid + masked edge-block path.
    x2 = jax.random.normal(k_x2, (1, C_in, 6, 6, 6), jnp.float32)
    y2 = jax.block_until_ready(pointwise_conv3d(x2, weight, bias))
    ref2 = _reference(x2, weight, bias)
    assert y2.shape == (1, C_out, 6, 6, 6)
    assert jnp.allclose(y2, ref2, atol=1e-5, rtol=1e-5)

    print("KERNEL_OK")
</pallas_src>

<mosaic_0001>
module attributes {stable_mosaic.version = 11 : i64} {
  func.func @_pointwise_conv_kernel(%arg0: i32, %arg1: i32, %arg2: memref<1x4x128xf32, #tpu.memory_space<vmem>>, %arg3: memref<1x4xf32, #tpu.memory_space<vmem>>, %arg4: memref<1x1xf32, #tpu.memory_space<vmem>>, %arg5: memref<1x1x128xf32, #tpu.memory_space<vmem>>) attributes {dimension_semantics = [#tpu.dimension_semantics<parallel>, #tpu.dimension_semantics<parallel>], iteration_bounds = array<i64: 4, 2>, scalar_prefetch = 0 : i64, scratch_operands = 0 : i64, tpu.core_type = #tpu.core_type<tc>, window_params = [{transform_indices = @transform_0, window_bounds = array<i64: 1, 4, 128>}, {pipeline_mode = #tpu.pipeline_mode<synchronous>, transform_indices = @transform_1, window_bounds = array<i64: 1, 4>}, {pipeline_mode = #tpu.pipeline_mode<synchronous>, transform_indices = @transform_2, window_bounds = array<i64: 1, 1>}, {transform_indices = @transform_3, window_bounds = array<i64: 1, 1, 128>}]} {
    %c0 = arith.constant 0 : index
    %c0_0 = arith.constant 0 : index
    %c0_1 = arith.constant 0 : index
    %0 = vector.load %arg2[%c0, %c0_0, %c0_1] : memref<1x4x128xf32, #tpu.memory_space<vmem>>, vector<1x4x128xf32>
    %1 = vector.shape_cast %0 : vector<1x4x128xf32> to vector<4x128xf32>
    %c0_2 = arith.constant 0 : index
    %c0_3 = arith.constant 0 : index
    %2 = vector.load %arg3[%c0_2, %c0_3] : memref<1x4xf32, #tpu.memory_space<vmem>>, vector<1x4xf32>
    %cst = arith.constant dense<0.000000e+00> : vector<1x128xf32>
    %3 = tpu.matmul %2, %1, %cst {dimension_numbers = #tpu.dot_dimension_numbers<[1], [0], [0], [1], [0, 0, 1, 1], [], []>} : vector<1x4xf32>, vector<4x128xf32>, vector<1x128xf32> -> vector<1x128xf32>
    %c0_4 = arith.constant 0 : index
    %c0_5 = arith.constant 0 : index
    %4 = vector.load %arg4[%c0_4, %c0_5] : memref<1x1xf32, #tpu.memory_space<vmem>>, vector<1x1xf32>
    %5 = vector.broadcast %4 : vector<1x1xf32> to vector<1x128xf32>
    %6 = arith.addf %3, %5 : vector<1x128xf32>
    %c0_6 = arith.constant 0 : index
    %c0_7 = arith.constant 0 : index
    %c0_8 = arith.constant 0 : index
    %7 = vector.load %arg5[%c0_6, %c0_7, %c0_8] : memref<1x1x128xf32, #tpu.memory_space<vmem>>, vector<1x1x128xf32>
    %8 = vector.shape_cast %7 : vector<1x1x128xf32> to vector<1x128xf32>
    %9 = vector.shape_cast %6 : vector<1x128xf32> to vector<1x1x128xf32>
    tpu.vector_store %arg5[%c0_6, %c0_7, %c0_8], %9 {strides = array<i32>} : memref<1x1x128xf32, #tpu.memory_space<vmem>>, vector<1x1x128xf32>,
    return
  }
  func.func @transform_0(%arg0: i32, %arg1: i32) -> (i32, i32, i32) {
    %c0_i32 = arith.constant 0 : i32
    %c0_i32_0 = arith.constant 0 : i32
    return %arg1, %c0_i32, %arg0 : i32, i32, i32
  }
  func.func @transform_1(%arg0: i32, %arg1: i32) -> (i32, i32) {
    %c0_i32 = arith.constant 0 : i32
    %c0_i32_0 = arith.constant 0 : i32
    %c0_i32_1 = arith.constant 0 : i32
    return %c0_i32, %c0_i32_0 : i32, i32
  }
  func.func @transform_2(%arg0: i32, %arg1: i32) -> (i32, i32) {
    %c0_i32 = arith.constant 0 : i32
    %c0_i32_0 = arith.constant 0 : i32
    %c0_i32_1 = arith.constant 0 : i32
    return %c0_i32, %c0_i32_0 : i32, i32
  }
  func.func @transform_3(%arg0: i32, %arg1: i32) -> (i32, i32, i32) {
    %c0_i32 = arith.constant 0 : i32
    %c0_i32_0 = arith.constant 0 : i32
    return %arg1, %c0_i32, %arg0 : i32, i32, i32
  }
}

</mosaic_0001>

<llo_original>
// kernel: tpu_custom_call.1
$region0: #{tpu_custom_call.1}
  #allocation0 [shape = 'u32[]', space=smem, size = 0x4, offset = 0x4, fixed_abs, tag = 'smem constant byte address 0x4 - core index']
  #allocation1 [shape = 'u32[72,128]{1,0:T(1,128)}', space=vmem, size = 0x9000, scoped, tag = 'internal scratch']
  #allocation2 [shape = 'f32[1,1]{1,0:T(1,128)S(1)}', space=vmem, size = 0x200, scoped, tag = 'scoped memory for tpu_custom_call.1']
  %s0 = inlined_call_operand.hbm [shape: f32[2,4,512], index: 0, kind: input, shape index: {}]
  %s1 = inlined_call_operand.vmem [shape: f32[1,4], index: 1, kind: input, shape index: {}]
  %s2 = inlined_call_operand.<no memory space> [shape: f32[1,1], index: 2, kind: input, shape index: {}]
  %s3 = inlined_call_operand.hbm [shape: f32[2,1,512], index: 3, kind: output, shape index: {}]
  %s4 = sld [smem:[#allocation0]]
  $region49: #{tpu_custom_call.1} parent=0
    _
  %s6 = ssub.s32 1, %s4
  %s7 = scalar_select 0, %s6, %s4
  %v8 = vstv %s2
  %9 = vst [vmem:[#allocation2] sm:$0x1] %v8
  $region1: #{tpu_custom_call.1} parent=0
    #allocation3 [shape = 'u8[4096]{0}', space=vmem, size = 0x1000, scoped, tag = 'input window, operand 0']
    #allocation4 [shape = 's32[2]{0}', space=sflag, size = 0x8, scoped, tag = 'scoped memory for tpu_custom_call.1']
    #allocation5 [shape = 's32[2]{0}', space=sflag, size = 0x8, scoped, tag = 'scoped memory for tpu_custom_call.1']
    #allocation6 [shape = 'u8[1024]{0}', space=vmem, size = 0x400, scoped, tag = 'output window, operand 0']
    %10 = vsyncpa [#allocation4], 0
    %s11 = scalar_lea.sflag [#allocation4], 1
    %12 = vsyncpa %s11, 0
    %13 = vsyncpa [#allocation5], 0
    %s14 = scalar_lea.sflag [#allocation5], 1
    %15 = vsyncpa %s14, 0
    loop: start=0, step=1, limit=10
    $region2: #{tpu_custom_call.1} parent=1 // loop_pre_header
      _
    $region3: #{tpu_custom_call.1} parent=1 // loop_header
      %s17 = sphi 0, %s21
      %p18 = scmp.ge.s32.totalorder %s17, 10
      %s24 = sphi 0, %s36
      %s25 = sphi 0, %s32
      %s26 = sphi 0, %s24
      %s27 = sphi 0, %s25
      %s28 = sphi 0, %s26
      %s29 = sphi 0, %s27
      %s41 = sphi 0, %s43
      %s44 = sphi 0, %s41
      %s45 = sphi 0, %s44
      %s61 = sphi 0, %s45
      %s65 = sphi 0, %s65
      %s67 = sphi 0, %s65
      %s68 = sphi 0, %s67
      %s82 = sphi 0, %s68
      %s86 = sphi 0, %s86
      %s88 = sphi 0, %s86
      %s89 = sphi 0, %s88
      %s103 = sphi 0, %s89
      %s111 = sphi 0, %s113
      %s114 = sphi 0, %s111
      %s115 = sphi 0, %s114
      %s131 = sphi 0, %s115
    $region4: #{tpu_custom_call.1} parent=1 // loop_header_branch
      %20 = sbr.rel (%p18) target = $region8
    $region5: #{tpu_custom_call.1} parent=1 // loop_body
      %s22 = ssub.s32 %s17, 1
      %s23 = ssub.s32 %s17, 2
      %s30 = sadd.s32 1, %s25
      %p31 = scmp.ge.s32.totalorder %s30, 2
      %s32 = scalar_select %p31, 0, %s30
      %s33 = sadd.s32 1, %s24
      %s34 = scalar_select %p31, %s33, %s24
      %p35 = scmp.ge.s32.totalorder %s34, 4
      %s36 = scalar_select %p35, 0, %s34
      %s37 = ssub.s32 %s25, %s32
      %s38 = ssub.s32 %s24, %s36
      %s39 = sor.u32 %s37, %s38
      %p40 = scmp.eq.s32.totalorder %s39, 0
      %s42 = sadd.s32 %s41, 1
      %s43 = scalar_select %p40, %s41, %s42
      %p46 = pneg %p40
      %p47 = scmp.eq.s32.totalorder %s17, 7
      %p48 = por %p46, %p47
      %p49 = scmp.ne.s32.totalorder %s41, %s44
      %p50 = scmp.eq.s32.totalorder %s17, 0
      %p51 = por %p49, %p50
      %p52 = scmp.ne.s32.totalorder %s41, %s44
      %p53 = scmp.eq.s32.totalorder %s22, 7
      %p54 = por %p52, %p53
      %p55 = scmp.ne.s32.totalorder %s44, %s45
      %p56 = scmp.eq.s32.totalorder %s22, 0
      %p57 = por %p55, %p56
      %p58 = scmp.ne.s32.totalorder %s44, %s45
      %p59 = scmp.eq.s32.totalorder %s23, 7
      %p60 = por %p58, %p59
      %p62 = scmp.ne.s32.totalorder %s45, %s61
      %p63 = scmp.eq.s32.totalorder %s23, 0
      %p64 = por %p62, %p63
      %s66 = sadd.s32 %s65, 1
      %p69 = scmp.eq.s32.totalorder %s17, 7
      %p70 = scmp.ne.s32.totalorder %s65, %s67
      %p71 = scmp.eq.s32.totalorder %s17, 0
      %p72 = por %p70, %p71
      %p73 = scmp.ne.s32.totalorder %s65, %s67
      %p74 = scmp.eq.s32.totalorder %s22, 7
      %p75 = por %p73, %p74
      %p76 = scmp.ne.s32.totalorder %s67, %s68
      %p77 = scmp.eq.s32.totalorder %s22, 0
      %p78 = por %p76, %p77
      %p79 = scmp.ne.s32.totalorder %s67, %s68
      %p80 = scmp.eq.s32.totalorder %s23, 7
      %p81 = por %p79, %p80
      %p83 = scmp.ne.s32.totalorder %s68, %s82
      %p84 = scmp.eq.s32.totalorder %s23, 0
      %p85 = por %p83, %p84
      %s87 = sadd.s32 %s86, 1
      %p90 = scmp.eq.s32.totalorder %s17, 7
      %p91 = scmp.ne.s32.totalorder %s86, %s88
      %p92 = scmp.eq.s32.totalorder %s17, 0
      %p93 = por %p91, %p92
      %p94 = scmp.ne.s32.totalorder %s86, %s88
      %p95 = scmp.eq.s32.totalorder %s22, 7
      %p96 = por %p94, %p95
      %p97 = scmp.ne.s32.totalorder %s88, %s89
      %p98 = scmp.eq.s32.totalorder %s22, 0
      %p99 = por %p97, %p98
      %p100 = scmp.ne.s32.totalorder %s88, %s89
      %p101 = scmp.eq.s32.totalorder %s23, 7
      %p102 = por %p100, %p101
      %p104 = scmp.ne.s32.totalorder %s89, %s103
      %p105 = scmp.eq.s32.totalorder %s23, 0
      %p106 = por %p104, %p105
      %s107 = ssub.s32 %s25, %s32
      %s108 = ssub.s32 %s24, %s36
      %s109 = sor.u32 %s107, %s108
      %p110 = scmp.eq.s32.totalorder %s109, 0
      %s112 = sadd.s32 %s111, 1
      %s113 = scalar_select %p110, %s111, %s112
      %p116 = pneg %p110
      %p117 = scmp.eq.s32.totalorder %s17, 7
      %p118 = por %p116, %p117
      %p119 = scmp.ne.s32.totalorder %s111, %s114
      %p120 = scmp.eq.s32.totalorder %s17, 0
      %p121 = por %p119, %p120
      %p122 = scmp.ne.s32.totalorder %s111, %s114
      %p123 = scmp.eq.s32.totalorder %s22, 7
      %p124 = por %p122, %p123
      %p125 = scmp.ne.s32.totalorder %s114, %s115
      %p126 = scmp.eq.s32.totalorder %s22, 0
      %p127 = por %p125, %p126
      %p128 = scmp.ne.s32.totalorder %s114, %s115
      %p129 = scmp.eq.s32.totalorder %s23, 7
      %p130 = por %p128, %p129
      %p132 = scmp.ne.s32.totalorder %s115, %s131
      %p133 = scmp.eq.s32.totalorder %s23, 0
      %p134 = por %p132, %p133
      %p135 = scmp.le.s32.totalorder 1, %s17
      %p136 = scmp.lt.s32.totalorder %s17, 9
      %p137 = pnand %p135, %p136
      %p138 = pneg %p137
      // Predicated region
      $region9: #{tpu_custom_call.1} parent=5 // pred_check
        _
      $region10: #{tpu_custom_call.1} parent=5 // pred_check_branch
        %140 = sbr.rel (%p137) target = $region12
      $region11: #{tpu_custom_call.1} parent=5 // pred_region
        %s141 = ssub.s32 %s17, 1
        // Predicated region
        $region13: #{tpu_custom_call.1} parent=11 // pred_check
          %p142 = pneg %p78
        $region14: #{tpu_custom_call.1} parent=11 // pred_check_branch
          %144 = sbr.rel (%p142) target = $region16
        $region15: #{tpu_custom_call.1} parent=11 // pred_region
          _
        $region16: #{tpu_custom_call.1} parent=11 // pred_fallthru
          _
        // Predicated region
        $region17: #{tpu_custom_call.1} parent=11 // pred_check
          %p145 = pneg %p99
        $region18: #{tpu_custom_call.1} parent=11 // pred_check_branch
          %147 = sbr.rel (%p145) target = $region20
        $region19: #{tpu_custom_call.1} parent=11 // pred_region
          _
        $region20: #{tpu_custom_call.1} parent=11 // pred_fallthru
          _
      $region12: #{tpu_custom_call.1} parent=5 // pred_fallthru
        _
      %p148 = scmp.lt.s32.totalorder %s17, 8
      // Predicated region
      $region21: #{tpu_custom_call.1} parent=5 // pred_check
        %p149 = pneg %p148
      $region22: #{tpu_custom_call.1} parent=5 // pred_check_branch
        %151 = sbr.rel (%p149) target = $region24
      $region23: #{tpu_custom_call.1} parent=5 // pred_region
        // Predicated region
        $region25: #{tpu_custom_call.1} parent=23 // pred_check
          %p152 = pneg %p51
        $region26: #{tpu_custom_call.1} parent=23 // pred_check_branch
          %154 = sbr.rel (%p152) target = $region28
        $region27: #{tpu_custom_call.1} parent=23 // pred_region
          %s155 = sand.u32 %s41, 1
          %s156 = scalar_lea.sflag [#allocation4], %s155
          %s157 = sand.u32 %s41, 1
          %s158 = smul.addr %s157, 4
          %s159 = scalar_lea.vmem [#allocation3], %s158
          %161 = vsyncadd %s156, 0
          %s162 = smul.addr %s25, 4
          %s163 = sadd.s32 %s24, %s162
          %s164 = smul.addr %s163, 4
          %s165 = scalar_lea.hbm %s0, %s164
          %s167 = sshll.u32 %s165, 4
          %s168 = int_to_ptr.hbm [resolvable:$true] %s167
          %s169 = sshll.u32 %s159, 4
          %s170 = int_to_ptr.vmem [resolvable:$true] %s169
          %172 = dma.hbm_to_vmem [thread:$0]  %s168, 64, %s170, %s156
        $region28: #{tpu_custom_call.1} parent=23 // pred_fallthru
          _
      $region24: #{tpu_custom_call.1} parent=5 // pred_fallthru
        _
      %p173 = scmp.le.s32.totalorder 1, %s17
      %p174 = scmp.lt.s32.totalorder %s17, 9
      %p175 = pnand %p173, %p174
      %p176 = pneg %p175
      // Predicated region
      $region29: #{tpu_custom_call.1} parent=5 // pred_check
        _
      $region30: #{tpu_custom_call.1} parent=5 // pred_check_branch
        %178 = sbr.rel (%p175) target = $region32
      $region31: #{tpu_custom_call.1} parent=5 // pred_region
        %s179 = ssub.s32 %s17, 1
        %s180 = sand.u32 %s44, 1
        %s181 = scalar_lea.sflag [#allocation4], %s180
        %s182 = sand.u32 %s44, 1
        %s183 = smul.addr %s182, 4
        %s184 = scalar_lea.vmem [#allocation3], %s183
        // Predicated region
        $region33: #{tpu_custom_call.1} parent=31 // pred_check
          %p185 = pneg %p57
        $region34: #{tpu_custom_call.1} parent=31 // pred_check_branch
          %187 = sbr.rel (%p185) target = $region36
        $region35: #{tpu_custom_call.1} parent=31 // pred_region
          %189 = dma.done %s181, 64
        $region36: #{tpu_custom_call.1} parent=31 // pred_fallthru
          _
        %s190 = sand.u32 %s44, 1
        %s191 = scalar_lea.sflag [#allocation4], %s190
        %s192 = sand.u32 %s44, 1
        %s193 = smul.addr %s192, 4
        %s194 = scalar_lea.vmem [#allocation3], %s193
        %p195 = pneg %p57
        %p196 = pneg %p54
        %p197 = pneg %p78
        %p198 = pneg %p75
        %p199 = pneg %p99
        %p200 = pneg %p96
        %p201 = pneg %p127
        %p202 = pneg %p124
        %s203 = sand.u32 %s114, 1
        %s204 = scalar_lea.sflag [#allocation5], %s203
        %s205 = sand.u32 %s114, 1
        %s206 = scalar_lea.vmem [#allocation6], %s205
        %v207 = vld [vmem:[%s184] sm:$0xf]
        %v208 = vld [vmem:[%s1] sm:$0x1]
        %v209 = vld [vmem:[#allocation2] sm:$0x1]
        %211 = vset.pattern.permute.xlu0 0
        %212 = vperm.xlu0 %211, %v209
        %v213 = vpop.permute.xlu0 %212
        %v215 = vperm.slane %v213, 0
        %vm216 = vcmask 31744
        %v218 = vsel %vm216, %v208, 0
        %vm220 = vcmask 1043456
        %v222 = vsel %vm220, %v207, 0
        %224 = vmatpush.msra.mxu0 0.0
        %225 = vmatpush.msra.mxu0 0.0
        %226 = vmatpush.msra.mxu0 0.0
        %227 = vmatpush.msra.mxu0 0.0
        %228 = vmatpush.msra.mxu0 0.0
        %229 = vmatpush.msra.mxu0 0.0
        %230 = vmatpush.msra.mxu0 0.0
        %231 = vmatpush.msra.mxu0 0.0
        %232 = vmatpush.msra.mxu0 0.0
        %233 = vmatpush.msra.mxu0 0.0
        %234 = vmatpush.msra.mxu0 0.0
        %235 = vmatpush.msra.mxu0 0.0
        %236 = vmatpush.msra.mxu0 0.0
        %237 = vmatpush.msra.mxu0 0.0
        %238 = vmatpush.msra.mxu0 0.0
        %239 = vmatpush.msra.mxu0 %v222
        %240 = vmatmul.f32.gmra.mxu0 %v218
        %v241 = vpop.f32.mrf.mxu0
        %v242 = vadd.f32 %v215, %v241
        %243 = vdwg.mxu0
        %244 = vst [vmem:[%s206] sm:$0x1] %v242
        %s245 = sand.u32 %s114, 1
        %s246 = scalar_lea.sflag [#allocation5], %s245
        %s247 = sand.u32 %s114, 1
        %s248 = scalar_lea.vmem [#allocation6], %s247
        // Predicated region
        $region37: #{tpu_custom_call.1} parent=31 // pred_check
          %p249 = pneg %p124
        $region38: #{tpu_custom_call.1} parent=31 // pred_check_branch
          %251 = sbr.rel (%p249) target = $region40
        $region39: #{tpu_custom_call.1} parent=31 // pred_region
          %253 = vsyncadd %s246, 0
          %s254 = smul.addr %s27, 4
          %s255 = sadd.s32 %s26, %s254
          %s256 = scalar_lea.hbm %s3, %s255
          %s258 = sshll.u32 %s248, 4
          %s259 = int_to_ptr.vmem [resolvable:$true] %s258
          %s260 = sshll.u32 %s256, 4
          %s261 = int_to_ptr.hbm [resolvable:$true] %s260
          %263 = dma.vmem_to_hbm [thread:$0]  %s259, 16, %s261, %s246
        $region40: #{tpu_custom_call.1} parent=31 // pred_fallthru
          _
      $region32: #{tpu_custom_call.1} parent=5 // pred_fallthru
        _
      %p264 = scmp.le.s32.totalorder 2, %s17
      // Predicated region
      $region41: #{tpu_custom_call.1} parent=5 // pred_check
        %p265 = pneg %p264
      $region42: #{tpu_custom_call.1} parent=5 // pred_check_branch
        %267 = sbr.rel (%p265) target = $region44
      $region43: #{tpu_custom_call.1} parent=5 // pred_region
        %s268 = ssub.s32 %s17, 2
        // Predicated region
        $region45: #{tpu_custom_call.1} parent=43 // pred_check
          %p269 = pneg %p130
        $region46: #{tpu_custom_call.1} parent=43 // pred_check_branch
          %271 = sbr.rel (%p269) target = $region48
        $region47: #{tpu_custom_call.1} parent=43 // pred_region
          %s272 = sand.u32 %s115, 1
          %s273 = scalar_lea.sflag [#allocation5], %s272
          %s274 = sand.u32 %s115, 1
          %s275 = scalar_lea.vmem [#allocation6], %s274
          %277 = dma.done %s273, 16
        $region48: #{tpu_custom_call.1} parent=43 // pred_fallthru
          _
      $region44: #{tpu_custom_call.1} parent=5 // pred_fallthru
        _
    $region6: #{tpu_custom_call.1} parent=1 // loop_footer
      %s21 = sadd.s32 1, %s17
    $region7: #{tpu_custom_call.1} parent=1 // loop_footer_branch
      %16 = sbr.rel target = $region3
    $region8: #{tpu_custom_call.1} parent=1 // loop_exit
      _
    %278 = vsyncpa [#allocation4], 1
    %s279 = scalar_lea.sflag [#allocation4], 1
    %280 = vsyncpa %s279, 1
    %281 = vsyncpa [#allocation5], 1
    %s282 = scalar_lea.sflag [#allocation5], 1
    %283 = vsyncpa %s282, 1

</llo_original>
